<compile_context>
chip_gen: v7x
topology: tpu7x:2x2x1
jax: 0.10.0
libtpu: 0.0.40
codegen_flags: <defaults>
</compile_context>

<pallas_src>
import jax
import jax.numpy as jnp
from jax.experimental import pallas as pl
from jax.experimental.pallas import tpu as pltpu

IN_FEATURES = 8
OUT_FEATURES = 15
OUT_PADDED = 128          # lane-dense output width


def linear_relu_kernel(x_ref, wb_ref, o_ref):
    # x_ref : (B, IN)            f32, SMEM (read as scalars)
    # wb_ref: (IN + 1, OUT_PADDED) f32, VMEM (rows 0..IN-1 = W.T, row IN = bias)
    # o_ref : (B, OUT_PADDED)    f32, VMEM
    B = o_ref.shape[0]
    bias_row = wb_ref[IN_FEATURES:IN_FEATURES + 1, :]        # (1, 128)
    for b in range(B):                                       # static unroll (B tiny)
        y = bias_row                                         # accumulator seed
        for k in range(IN_FEATURES):                         # static unroll, K = 8
            # scalar (from SMEM) * resident weight row: pure VPU, no XLU traffic
            y = y + x_ref[b, k] * wb_ref[k:k + 1, :]
        o_ref[b:b + 1, :] = jnp.maximum(y, 0.0)              # ReLU


def init_wb(weight, bias):
    """One-time parameter preprocessing (hoisted out of the per-call path).

    weight: (OUT, IN) f32 (PyTorch layout), bias: (OUT,) f32
    -> fused (IN+1, OUT_PADDED) f32 slab: rows 0..IN-1 = W.T (zero-padded to
       128 lanes), row IN = bias. Padded lanes stay zero, so padded outputs
       are relu(0) = 0 and never leak into the sliced result.
    """
    wb = jnp.zeros((IN_FEATURES + 1, OUT_PADDED), jnp.float32)
    wb = wb.at[:IN_FEATURES, :OUT_FEATURES].set(weight.T.astype(jnp.float32))
    wb = wb.at[IN_FEATURES, :OUT_FEATURES].set(bias.astype(jnp.float32))
    return wb


@jax.jit
def linear_relu(x, wb):
    """x: (B, IN) f32, wb: (IN+1, OUT_PADDED) f32 (from init_wb) -> (B, OUT) f32."""
    B = x.shape[0]
    out_p = pl.pallas_call(
        linear_relu_kernel,
        out_shape=jax.ShapeDtypeStruct((B, OUT_PADDED), jnp.float32),
        in_specs=[
            pl.BlockSpec(memory_space=pltpu.MemorySpace.SMEM),   # x (scalars)
            pl.BlockSpec(memory_space=pltpu.MemorySpace.VMEM),   # fused W|b
        ],
        out_specs=pl.BlockSpec(memory_space=pltpu.MemorySpace.VMEM),
    )(x.astype(jnp.float32), wb)
    return out_p[:, :OUT_FEATURES]


if __name__ == "__main__":
    key = jax.random.PRNGKey(0)
    kx, kw, kb = jax.random.split(key, 3)

    # Input matching the module: x1 = torch.randn(1, 8)
    x1 = jax.random.normal(kx, (1, IN_FEATURES), dtype=jnp.float32)

    # Deterministic "Linear(8, 15)" parameters (PyTorch stores weight (OUT, IN)).
    bound = 1.0 / (IN_FEATURES ** 0.5)
    weight = jax.random.uniform(
        kw, (OUT_FEATURES, IN_FEATURES), dtype=jnp.float32,
        minval=-bound, maxval=bound)
    bias = jax.random.uniform(
        kb, (OUT_FEATURES,), dtype=jnp.float32, minval=-bound, maxval=bound)

    # One-time parameter prep (cached across calls).
    wb = jax.block_until_ready(init_wb(weight, bias))

    out = linear_relu(x1, wb)
    out = jax.block_until_ready(out)

    # Reference check in plain JAX.
    ref = jnp.maximum(x1 @ weight.T + bias.reshape(1, -1), 0.0)
    assert out.shape == (1, OUT_FEATURES)
    assert jnp.allclose(out, ref, atol=1e-5, rtol=1e-5)

    # TODO(synk): the original forward returns None; we return the activation.
    print("KERNEL_OK")
</pallas_src>

<mosaic_0001>
module attributes {stable_mosaic.version = 11 : i64} {
  func.func @linear_relu_kernel(%arg0: memref<1x8xf32, #tpu.memory_space<smem>>, %arg1: memref<9x128xf32, #tpu.memory_space<vmem>>, %arg2: memref<1x128xf32, #tpu.memory_space<vmem>>) attributes {dimension_semantics = [], scalar_prefetch = 0 : i64, scratch_operands = 0 : i64, tpu.core_type = #tpu.core_type<tc>} {
    %c8 = arith.constant 8 : index
    %c0 = arith.constant 0 : index
    %0 = vector.load %arg1[%c8, %c0] : memref<9x128xf32, #tpu.memory_space<vmem>>, vector<1x128xf32>
    %c0_0 = arith.constant 0 : index
    %c0_1 = arith.constant 0 : index
    %1 = memref.load %arg0[%c0_0, %c0_1] : memref<1x8xf32, #tpu.memory_space<smem>>
    %c0_2 = arith.constant 0 : index
    %c0_3 = arith.constant 0 : index
    %2 = vector.load %arg1[%c0_2, %c0_3] : memref<9x128xf32, #tpu.memory_space<vmem>>, vector<1x128xf32>
    %3 = vector.broadcast %1 : f32 to vector<1x128xf32>
    %4 = arith.mulf %3, %2 : vector<1x128xf32>
    %5 = arith.addf %0, %4 : vector<1x128xf32>
    %c0_4 = arith.constant 0 : index
    %c1 = arith.constant 1 : index
    %6 = memref.load %arg0[%c0_4, %c1] : memref<1x8xf32, #tpu.memory_space<smem>>
    %c1_5 = arith.constant 1 : index
    %c0_6 = arith.constant 0 : index
    %7 = vector.load %arg1[%c1_5, %c0_6] : memref<9x128xf32, #tpu.memory_space<vmem>>, vector<1x128xf32>
    %8 = vector.broadcast %6 : f32 to vector<1x128xf32>
    %9 = arith.mulf %8, %7 : vector<1x128xf32>
    %10 = arith.addf %5, %9 : vector<1x128xf32>
    %c0_7 = arith.constant 0 : index
    %c2 = arith.constant 2 : index
    %11 = memref.load %arg0[%c0_7, %c2] : memref<1x8xf32, #tpu.memory_space<smem>>
    %c2_8 = arith.constant 2 : index
    %c0_9 = arith.constant 0 : index
    %12 = vector.load %arg1[%c2_8, %c0_9] : memref<9x128xf32, #tpu.memory_space<vmem>>, vector<1x128xf32>
    %13 = vector.broadcast %11 : f32 to vector<1x128xf32>
    %14 = arith.mulf %13, %12 : vector<1x128xf32>
    %15 = arith.addf %10, %14 : vector<1x128xf32>
    %c0_10 = arith.constant 0 : index
    %c3 = arith.constant 3 : index
    %16 = memref.load %arg0[%c0_10, %c3] : memref<1x8xf32, #tpu.memory_space<smem>>
    %c3_11 = arith.constant 3 : index
    %c0_12 = arith.constant 0 : index
    %17 = vector.load %arg1[%c3_11, %c0_12] : memref<9x128xf32, #tpu.memory_space<vmem>>, vector<1x128xf32>
    %18 = vector.broadcast %16 : f32 to vector<1x128xf32>
    %19 = arith.mulf %18, %17 : vector<1x128xf32>
    %20 = arith.addf %15, %19 : vector<1x128xf32>
    %c0_13 = arith.constant 0 : index
    %c4 = arith.constant 4 : index
    %21 = memref.load %arg0[%c0_13, %c4] : memref<1x8xf32, #tpu.memory_space<smem>>
    %c4_14 = arith.constant 4 : index
    %c0_15 = arith.constant 0 : index
    %22 = vector.load %arg1[%c4_14, %c0_15] : memref<9x128xf32, #tpu.memory_space<vmem>>, vector<1x128xf32>
    %23 = vector.broadcast %21 : f32 to vector<1x128xf32>
    %24 = arith.mulf %23, %22 : vector<1x128xf32>
    %25 = arith.addf %20, %24 : vector<1x128xf32>
    %c0_16 = arith.constant 0 : index
    %c5 = arith.constant 5 : index
    %26 = memref.load %arg0[%c0_16, %c5] : memref<1x8xf32, #tpu.memory_space<smem>>
    %c5_17 = arith.constant 5 : index
    %c0_18 = arith.constant 0 : index
    %27 = vector.load %arg1[%c5_17, %c0_18] : memref<9x128xf32, #tpu.memory_space<vmem>>, vector<1x128xf32>
    %28 = vector.broadcast %26 : f32 to vector<1x128xf32>
    %29 = arith.mulf %28, %27 : vector<1x128xf32>
    %30 = arith.addf %25, %29 : vector<1x128xf32>
    %c0_19 = arith.constant 0 : index
    %c6 = arith.constant 6 : index
    %31 = memref.load %arg0[%c0_19, %c6] : memref<1x8xf32, #tpu.memory_space<smem>>
    %c6_20 = arith.constant 6 : index
    %c0_21 = arith.constant 0 : index
    %32 = vector.load %arg1[%c6_20, %c0_21] : memref<9x128xf32, #tpu.memory_space<vmem>>, vector<1x128xf32>
    %33 = vector.broadcast %31 : f32 to vector<1x128xf32>
    %34 = arith.mulf %33, %32 : vector<1x128xf32>
    %35 = arith.addf %30, %34 : vector<1x128xf32>
    %c0_22 = arith.constant 0 : index
    %c7 = arith.constant 7 : index
    %36 = memref.load %arg0[%c0_22, %c7] : memref<1x8xf32, #tpu.memory_space<smem>>
    %c7_23 = arith.constant 7 : index
    %c0_24 = arith.constant 0 : index
    %37 = vector.load %arg1[%c7_23, %c0_24] : memref<9x128xf32, #tpu.memory_space<vmem>>, vector<1x128xf32>
    %38 = vector.broadcast %36 : f32 to vector<1x128xf32>
    %39 = arith.mulf %38, %37 : vector<1x128xf32>
    %40 = arith.addf %35, %39 : vector<1x128xf32>
    %cst = arith.constant 0.000000e+00 : f32
    %41 = vector.broadcast %cst : f32 to vector<1x128xf32>
    %42 = arith.maximumf %40, %41 : vector<1x128xf32>
    %c0_25 = arith.constant 0 : index
    %c0_26 = arith.constant 0 : index
    %43 = vector.load %arg2[%c0_25, %c0_26] : memref<1x128xf32, #tpu.memory_space<vmem>>, vector<1x128xf32>
    tpu.vector_store %arg2[%c0_25, %c0_26], %42 {strides = array<i32>} : memref<1x128xf32, #tpu.memory_space<vmem>>, vector<1x128xf32>,
    return
  }
}

</mosaic_0001>

<llo_original>
// kernel: linear_relu.1
$region0: #{linear_relu.1}
  #allocation0 [shape = 'u32[]', space=smem, size = 0x4, offset = 0x4, fixed_abs, tag = 'smem constant byte address 0x4 - core index']
  #allocation1 [shape = 'u32[144,128]{1,0:T(1,128)}', space=vmem, size = 0x12000, scoped, tag = 'internal scratch']
  %s0 = inlined_call_operand.hbm [shape: f32[1,8], index: 0, kind: input, shape index: {}]
  %s1 = inlined_call_operand.hbm [shape: f32[9,128], index: 1, kind: input, shape index: {}]
  %s2 = inlined_call_operand.hbm [shape: f32[1,128], index: 2, kind: output, shape index: {}]
  %s3 = sld [smem:[#allocation0]]
  $region26: #{linear_relu.1} parent=0
    _
  %s5 = ssub.s32 1, %s3
  %s6 = scalar_select 0, %s5, %s3
  $region1: #{linear_relu.1} parent=0
    #allocation2 [shape = 'u8[512]{0}', space=smem, size = 0x200, scoped, tag = 'input window, operand 0, single buffered']
    #allocation3 [shape = 's32[1]{0}', space=sflag, size = 0x4, scoped, tag = 'scoped memory for linear_relu.1']
    #allocation4 [shape = 's32[1]{0}', space=sflag, size = 0x4, scoped, tag = 'scoped memory for linear_relu.1']
    #allocation5 [shape = 's32[1]{0}', space=sflag, size = 0x4, scoped, tag = 'scoped memory for linear_relu.1']
    #allocation6 [shape = 'u8[8192]{0}', space=vmem, size = 0x2000, scoped, tag = 'input window, operand 1, single buffered']
    #allocation7 [shape = 'u8[512]{0}', space=vmem, size = 0x400, scoped, tag = 'output window, operand 0, single buffered']
    %7 = vsyncpa [#allocation5], 0
    %8 = vsyncpa [#allocation3], 0
    %9 = vsyncpa [#allocation4], 0
    // Predicated region
    $region2: #{linear_relu.1} parent=1 // pred_check
      _
    $region3: #{linear_relu.1} parent=1 // pred_check_branch
      %11 = sbr.rel (0) target = $region5
    $region4: #{linear_relu.1} parent=1 // pred_region
      %s13 = ssub.s32 16, 16
      %14 = vsyncadd [#allocation5], %s13
      %17 = dma.hbm_to_smem %s0, 16, [#allocation2], [#allocation5]
    $region5: #{linear_relu.1} parent=1 // pred_fallthru
      _
    // Predicated region
    $region6: #{linear_relu.1} parent=1 // pred_check
      _
    $region7: #{linear_relu.1} parent=1 // pred_check_branch
      %19 = sbr.rel (0) target = $region9
    $region8: #{linear_relu.1} parent=1 // pred_region
      %s21 = ssub.s32 256, 256
      %22 = vsyncadd [#allocation3], %s21
      %s23 = sshll.u32 [#allocation6], 4
      %s24 = int_to_ptr.vmem [resolvable:$true] %s23
      %29 = dma.hbm_to_vmem [thread:$0]  %s1, 256, %s24, [#allocation3], 128, 128, 8
    $region9: #{linear_relu.1} parent=1 // pred_fallthru
      _
    // Predicated region
    $region10: #{linear_relu.1} parent=1 // pred_check
      _
    $region11: #{linear_relu.1} parent=1 // pred_check_branch
      %31 = sbr.rel (0) target = $region13
    $region12: #{linear_relu.1} parent=1 // pred_region
      %32 = dma.done [#allocation5], 16
    $region13: #{linear_relu.1} parent=1 // pred_fallthru
      _
    // Predicated region
    $region14: #{linear_relu.1} parent=1 // pred_check
      _
    $region15: #{linear_relu.1} parent=1 // pred_check_branch
      %34 = sbr.rel (0) target = $region17
    $region16: #{linear_relu.1} parent=1 // pred_region
      %35 = dma.done [#allocation3], 256
    $region17: #{linear_relu.1} parent=1 // pred_fallthru
      _
    %36 = sfence
    %v37 = vld [vmem:[#allocation6 + $0x8] sm:$0x1]
    %s38 = sld [smem:[#allocation2]]
    %v39 = vld [vmem:[#allocation6] sm:$0x1]
    %v40 = vstv %s38
    %v41 = vmul.f32 %v40, %v39
    %v42 = vadd.f32 %v37, %v41
    %s43 = sld [smem:[#allocation2 + $0x1]]
    %v44 = vld [vmem:[#allocation6 + $0x1] sm:$0x1]
    %v45 = vstv %s43
    %v46 = vmul.f32 %v45, %v44
    %v47 = vadd.f32 %v42, %v46
    %s48 = sld [smem:[#allocation2 + $0x2]]
    %v49 = vld [vmem:[#allocation6 + $0x2] sm:$0x1]
    %v50 = vstv %s48
    %v51 = vmul.f32 %v50, %v49
    %v52 = vadd.f32 %v47, %v51
    %s53 = sld [smem:[#allocation2 + $0x3]]
    %v54 = vld [vmem:[#allocation6 + $0x3] sm:$0x1]
    %v55 = vstv %s53
    %v56 = vmul.f32 %v55, %v54
    %v57 = vadd.f32 %v52, %v56
    %s58 = sld [smem:[#allocation2 + $0x4]]
    %v59 = vld [vmem:[#allocation6 + $0x4] sm:$0x1]
    %v60 = vstv %s58
    %v61 = vmul.f32 %v60, %v59
    %v62 = vadd.f32 %v57, %v61
    %s63 = sld [smem:[#allocation2 + $0x5]]
    %v64 = vld [vmem:[#allocation6 + $0x5] sm:$0x1]
    %v65 = vstv %s63
    %v66 = vmul.f32 %v65, %v64
    %v67 = vadd.f32 %v62, %v66
    %s68 = sld [smem:[#allocation2 + $0x6]]
    %v69 = vld [vmem:[#allocation6 + $0x6] sm:$0x1]
    %v70 = vstv %s68
    %v71 = vmul.f32 %v70, %v69
    %v72 = vadd.f32 %v67, %v71
    %s73 = sld [smem:[#allocation2 + $0x7]]
    %v74 = vld [vmem:[#allocation6 + $0x7] sm:$0x1]
    %v75 = vstv %s73
    %v76 = vmul.f32 %v75, %v74
    %v77 = vadd.f32 %v72, %v76
    %v78 = vmax.f32 %v77, 0.0
    %79 = vst [vmem:[#allocation7] sm:$0x1] %v78
    // Predicated region
    $region18: #{linear_relu.1} parent=1 // pred_check
      _
    $region19: #{linear_relu.1} parent=1 // pred_check_branch
      %81 = sbr.rel (0) target = $region21
    $region20: #{linear_relu.1} parent=1 // pred_region
      %s83 = ssub.s32 16, 16
      %84 = vsyncadd [#allocation4], %s83
      %s86 = sshll.u32 [#allocation7], 4
      %s87 = int_to_ptr.vmem [resolvable:$true] %s86
      %89 = dma.vmem_to_hbm [thread:$0]  %s87, 16, %s2, [#allocation4]
    $region21: #{linear_relu.1} parent=1 // pred_fallthru
      _
    // Predicated region
    $region22: #{linear_relu.1} parent=1 // pred_check
      _
    $region23: #{linear_relu.1} parent=1 // pred_check_branch
      %91 = sbr.rel (0) target = $region25
    $region24: #{linear_relu.1} parent=1 // pred_region
      %92 = dma.done [#allocation4], 16
    $region25: #{linear_relu.1} parent=1 // pred_fallthru
      _
    %93 = vsyncpa [#allocation3], 1
    %94 = vsyncpa [#allocation4], 1
    %95 = vsyncpa [#allocation5], 1

</llo_original>
